<compile_context>
chip_gen: v5e
topology: v5e:2x2
jax: 0.10.0
libtpu: 0.0.40
codegen_flags: <defaults>
</compile_context>

<pallas_src>
import jax
import jax.numpy as jnp
from jax.experimental import pallas as pl
from jax.experimental.pallas import tpu as pltpu


def se_block_kernel(x_ref, w1_ref, b1_ref, w2_ref, b2_ref, o_ref):
    """One (TM, D) row tile: g = sigmoid(relu(x@W1t+b1)@W2t+b2); out = x*g."""
    x = x_ref[...]                                        # (TM, D) f32
    x_bf = x.astype(jnp.bfloat16)                         # MXU inputs in bf16
    h = jnp.dot(x_bf, w1_ref[...],
                preferred_element_type=jnp.float32) + b1_ref[...]   # f32 acc
    h = jnp.maximum(h, 0.0)                               # ReLU in f32
    g = jnp.dot(h.astype(jnp.bfloat16), w2_ref[...],
                preferred_element_type=jnp.float32) + b2_ref[...]   # f32 acc
    g = jax.nn.sigmoid(g)                                 # f32 gate
    o_ref[...] = (x * g).astype(o_ref.dtype)              # elementwise re-weight


def _pick_tm(batch, d, weight_bytes, budget_bytes=14 * 1024 * 1024):
    """Largest power-of-two row tile fitting a conservative VMEM budget:
    resident bf16 weights + biases, double-buffered f32 x and out tiles, and
    roughly two f32 tile-sized intermediates.  The 14 MiB budget stays under
    the default scoped-VMEM limit on v5e (16 MiB) and v6e/v7x (32 MiB)."""
    for tm in (1024, 512, 256, 128, 64, 32, 16, 8):
        if tm > batch:
            continue
        tile_bytes = tm * d * 4                       # one f32 (TM, D) tile
        need = weight_bytes + 2 * d * 4 + (2 * 2 + 2) * tile_bytes
        if need <= budget_bytes:
            return tm
    return min(batch, 8)


def se_block(x, w1_t, b1, w2_t, b2, *, tm=None):
    """x: (B, D) f32.  w1_t/w2_t: (D_in, D_out) pre-transposed nn.Linear
    weights (any float dtype; cast to bf16 here).  b1/b2: (D,) or (1, D)."""
    B, D = x.shape

    # One-time host/XLA-side prep: bf16 weights halve the resident VMEM
    # footprint and feed the MXU at native bf16 rate; biases kept in f32.
    w1_t = w1_t.astype(jnp.bfloat16)
    w2_t = w2_t.astype(jnp.bfloat16)
    b1 = b1.reshape(1, D).astype(jnp.float32)
    b2 = b2.reshape(1, D).astype(jnp.float32)

    weight_bytes = 2 * D * D * w1_t.dtype.itemsize
    if tm is None:
        tm = _pick_tm(B, D, weight_bytes)
    tm = min(tm, B)
    grid = (pl.cdiv(B, tm),)

    cost = pl.CostEstimate(
        flops=4 * B * D * D,                              # two (B,D)x(D,D) matmuls
        transcendentals=B * D,                            # sigmoid
        bytes_accessed=2 * B * D * x.dtype.itemsize       # x read + out write
        + weight_bytes + 2 * D * 4,                       # resident weights/biases
    )

    return pl.pallas_call(
        se_block_kernel,
        out_shape=jax.ShapeDtypeStruct((B, D), x.dtype),
        grid=grid,
        in_specs=[
            pl.BlockSpec((tm, D), lambda i: (i, 0)),      # x: streams row tiles
            pl.BlockSpec((D, D), lambda i: (0, 0)),       # W1^T: resident in VMEM
            pl.BlockSpec((1, D), lambda i: (0, 0)),       # b1:   resident
            pl.BlockSpec((D, D), lambda i: (0, 0)),       # W2^T: resident
            pl.BlockSpec((1, D), lambda i: (0, 0)),       # b2:   resident
        ],
        out_specs=pl.BlockSpec((tm, D), lambda i: (i, 0)),
        compiler_params=pltpu.CompilerParams(
            dimension_semantics=("parallel",),            # megacore split on v7x
        ),
        cost_estimate=cost,
    )(x, w1_t, b1, w2_t, b2)


def se_block_ref_f32(x, w1_t, b1, w2_t, b2):
    """Exact f32 reference (PyTorch module semantics)."""
    h = jnp.maximum(x @ w1_t + b1, 0.0)
    g = jax.nn.sigmoid(h @ w2_t + b2)
    return x * g


def se_block_ref_bf16(x, w1_t, b1, w2_t, b2):
    """Reference matching the kernel's bf16-matmul / f32-accumulate numerics."""
    h = jnp.dot(x.astype(jnp.bfloat16), w1_t.astype(jnp.bfloat16),
                preferred_element_type=jnp.float32) + b1
    h = jnp.maximum(h, 0.0)
    g = jnp.dot(h.astype(jnp.bfloat16), w2_t.astype(jnp.bfloat16),
                preferred_element_type=jnp.float32) + b2
    g = jax.nn.sigmoid(g)
    return x * g


if __name__ == "__main__":
    # Demo shapes: input_dim=128 (lane-dense, multiple of 128), 512 tokens.
    # tm=128 is passed explicitly so the batch grid streams 4 row tiles and
    # exercises the resident-weight / double-buffered pipeline; production use
    # would leave tm=None and let _pick_tm choose the largest tile that fits.
    B, D = 512, 128
    key = jax.random.PRNGKey(0)
    kx, kw1, kb1, kw2, kb2 = jax.random.split(key, 5)

    x = jax.random.normal(kx, (B, D), dtype=jnp.float32)

    # nn.Linear stores W as (out, in); build that, then pre-transpose for the kernel.
    w1 = jax.random.normal(kw1, (D, D), dtype=jnp.float32) * 0.1
    b1 = jax.random.normal(kb1, (D,), dtype=jnp.float32) * 0.1
    w2 = jax.random.normal(kw2, (D, D), dtype=jnp.float32) * 0.1
    b2 = jax.random.normal(kb2, (D,), dtype=jnp.float32) * 0.1
    w1_t, w2_t = w1.T, w2.T

    out = se_block(x, w1_t, b1, w2_t, b2, tm=128)
    out = jax.block_until_ready(out)
    assert out.shape == (B, D)

    b1_2d = b1.reshape(1, D)
    b2_2d = b2.reshape(1, D)
    ref_bf16 = se_block_ref_bf16(x, w1_t, b1_2d, w2_t, b2_2d)
    ref_f32 = se_block_ref_f32(x, w1_t, b1_2d, w2_t, b2_2d)

    # Tight check vs a reference with identical bf16-input / f32-accumulate numerics.
    assert jnp.allclose(out, ref_bf16, atol=2e-3, rtol=2e-3), "mismatch vs bf16 reference"
    # Looser check vs the exact-f32 PyTorch-semantics reference (bf16 rounding only).
    assert jnp.allclose(out, ref_f32, atol=5e-2, rtol=5e-2), "mismatch vs f32 reference"

    print("KERNEL_OK")
</pallas_src>

<mosaic_0001>
module attributes {stable_mosaic.version = 11 : i64} {
  func.func @se_block_kernel(%arg0: i32, %arg1: memref<128x128xf32, #tpu.memory_space<vmem>>, %arg2: memref<128x128xbf16, #tpu.memory_space<vmem>>, %arg3: memref<1x128xf32, #tpu.memory_space<vmem>>, %arg4: memref<128x128xbf16, #tpu.memory_space<vmem>>, %arg5: memref<1x128xf32, #tpu.memory_space<vmem>>, %arg6: memref<128x128xf32, #tpu.memory_space<vmem>>) attributes {dimension_semantics = [#tpu.dimension_semantics<parallel>], iteration_bounds = array<i64: 4>, scalar_prefetch = 0 : i64, scratch_operands = 0 : i64, tpu.core_type = #tpu.core_type<tc>, window_params = [{transform_indices = @transform_0, window_bounds = array<i64: 128, 128>}, {pipeline_mode = #tpu.pipeline_mode<synchronous>, transform_indices = @transform_1, window_bounds = array<i64: 128, 128>}, {pipeline_mode = #tpu.pipeline_mode<synchronous>, transform_indices = @transform_2, window_bounds = array<i64: 1, 128>}, {pipeline_mode = #tpu.pipeline_mode<synchronous>, transform_indices = @transform_3, window_bounds = array<i64: 128, 128>}, {pipeline_mode = #tpu.pipeline_mode<synchronous>, transform_indices = @transform_4, window_bounds = array<i64: 1, 128>}, {transform_indices = @transform_5, window_bounds = array<i64: 128, 128>}]} {
    %c0 = arith.constant 0 : index
    %c0_0 = arith.constant 0 : index
    %0 = vector.load %arg1[%c0, %c0_0] : memref<128x128xf32, #tpu.memory_space<vmem>>, vector<128x128xf32>
    %1 = arith.truncf %0 : vector<128x128xf32> to vector<128x128xbf16>
    %c0_1 = arith.constant 0 : index
    %c0_2 = arith.constant 0 : index
    %2 = vector.load %arg2[%c0_1, %c0_2] : memref<128x128xbf16, #tpu.memory_space<vmem>>, vector<128x128xbf16>
    %cst = arith.constant dense<0.000000e+00> : vector<128x128xf32>
    %3 = tpu.matmul %1, %2, %cst {dimension_numbers = #tpu.dot_dimension_numbers<[1], [0], [0], [1], [0, 0, 1, 1], [], []>} : vector<128x128xbf16>, vector<128x128xbf16>, vector<128x128xf32> -> vector<128x128xf32>
    %c0_3 = arith.constant 0 : index
    %c0_4 = arith.constant 0 : index
    %4 = vector.load %arg3[%c0_3, %c0_4] : memref<1x128xf32, #tpu.memory_space<vmem>>, vector<1x128xf32>
    %5 = vector.broadcast %4 : vector<1x128xf32> to vector<128x128xf32>
    %6 = arith.addf %3, %5 : vector<128x128xf32>
    %cst_5 = arith.constant 0.000000e+00 : f32
    %7 = vector.broadcast %cst_5 : f32 to vector<128x128xf32>
    %8 = arith.maximumf %6, %7 : vector<128x128xf32>
    %9 = arith.truncf %8 : vector<128x128xf32> to vector<128x128xbf16>
    %c0_6 = arith.constant 0 : index
    %c0_7 = arith.constant 0 : index
    %10 = vector.load %arg4[%c0_6, %c0_7] : memref<128x128xbf16, #tpu.memory_space<vmem>>, vector<128x128xbf16>
    %cst_8 = arith.constant dense<0.000000e+00> : vector<128x128xf32>
    %11 = tpu.matmul %9, %10, %cst_8 {dimension_numbers = #tpu.dot_dimension_numbers<[1], [0], [0], [1], [0, 0, 1, 1], [], []>} : vector<128x128xbf16>, vector<128x128xbf16>, vector<128x128xf32> -> vector<128x128xf32>
    %c0_9 = arith.constant 0 : index
    %c0_10 = arith.constant 0 : index
    %12 = vector.load %arg5[%c0_9, %c0_10] : memref<1x128xf32, #tpu.memory_space<vmem>>, vector<1x128xf32>
    %13 = vector.broadcast %12 : vector<1x128xf32> to vector<128x128xf32>
    %14 = arith.addf %11, %13 : vector<128x128xf32>
    %15 = arith.negf %14 : vector<128x128xf32>
    %16 = math.exp %15 : vector<128x128xf32>
    %cst_11 = arith.constant 1.000000e+00 : f32
    %17 = vector.broadcast %cst_11 : f32 to vector<128x128xf32>
    %18 = arith.addf %17, %16 : vector<128x128xf32>
    %19 = arith.divf %17, %18 : vector<128x128xf32>
    %20 = arith.mulf %0, %19 : vector<128x128xf32>
    %c0_12 = arith.constant 0 : index
    %c0_13 = arith.constant 0 : index
    %21 = vector.load %arg6[%c0_12, %c0_13] : memref<128x128xf32, #tpu.memory_space<vmem>>, vector<128x128xf32>
    tpu.vector_store %arg6[%c0_12, %c0_13], %20 {strides = array<i32>} : memref<128x128xf32, #tpu.memory_space<vmem>>, vector<128x128xf32>,
    return
  }
  func.func @transform_0(%arg0: i32) -> (i32, i32) {
    %c0_i32 = arith.constant 0 : i32
    %c0_i32_0 = arith.constant 0 : i32
    return %arg0, %c0_i32 : i32, i32
  }
  func.func @transform_1(%arg0: i32) -> (i32, i32) {
    %c0_i32 = arith.constant 0 : i32
    %c0_i32_0 = arith.constant 0 : i32
    %c0_i32_1 = arith.constant 0 : i32
    return %c0_i32, %c0_i32_0 : i32, i32
  }
  func.func @transform_2(%arg0: i32) -> (i32, i32) {
    %c0_i32 = arith.constant 0 : i32
    %c0_i32_0 = arith.constant 0 : i32
    %c0_i32_1 = arith.constant 0 : i32
    return %c0_i32, %c0_i32_0 : i32, i32
  }
  func.func @transform_3(%arg0: i32) -> (i32, i32) {
    %c0_i32 = arith.constant 0 : i32
    %c0_i32_0 = arith.constant 0 : i32
    %c0_i32_1 = arith.constant 0 : i32
    return %c0_i32, %c0_i32_0 : i32, i32
  }
  func.func @transform_4(%arg0: i32) -> (i32, i32) {
    %c0_i32 = arith.constant 0 : i32
    %c0_i32_0 = arith.constant 0 : i32
    %c0_i32_1 = arith.constant 0 : i32
    return %c0_i32, %c0_i32_0 : i32, i32
  }
  func.func @transform_5(%arg0: i32) -> (i32, i32) {
    %c0_i32 = arith.constant 0 : i32
    %c0_i32_0 = arith.constant 0 : i32
    return %arg0, %c0_i32 : i32, i32
  }
}

</mosaic_0001>

<llo_original>
// kernel: tpu_custom_call.1
$region0: #{tpu_custom_call.1}
  #allocation0 [shape = 'u32[]', space=smem, size = 0x4, offset = 0x4, fixed_abs, tag = 'smem constant byte address 0x4 - core index']
  #allocation1 [shape = 'u32[72,128]{1,0:T(1,128)}', space=vmem, size = 0x9000, scoped, tag = 'internal scratch']
  %s0 = inlined_call_operand.hbm [shape: f32[512,128], index: 0, kind: input, shape index: {}]
  %s1 = inlined_call_operand.hbm [shape: bf16[128,128], index: 1, kind: input, shape index: {}]
  %s2 = inlined_call_operand.vmem [shape: f32[1,128], index: 2, kind: input, shape index: {}]
  %s3 = inlined_call_operand.hbm [shape: bf16[128,128], index: 3, kind: input, shape index: {}]
  %s4 = inlined_call_operand.vmem [shape: f32[1,128], index: 4, kind: input, shape index: {}]
  %s5 = inlined_call_operand.hbm [shape: f32[512,128], index: 5, kind: output, shape index: {}]
  %s6 = sld [smem:[#allocation0]]
  $region65: #{tpu_custom_call.1} parent=0
    _
  %s8 = ssub.s32 1, %s6
  %s9 = scalar_select 0, %s8, %s6
  $region1: #{tpu_custom_call.1} parent=0
    #allocation2 [shape = 'u8[131072]{0}', space=vmem, size = 0x20000, scoped, tag = 'input window, operand 0']
    #allocation3 [shape = 's32[2]{0}', space=sflag, size = 0x8, scoped, tag = 'scoped memory for tpu_custom_call.1']
    #allocation4 [shape = 's32[2]{0}', space=sflag, size = 0x8, scoped, tag = 'scoped memory for tpu_custom_call.1']
    #allocation5 [shape = 'u8[32768]{0}', space=vmem, size = 0x8000, scoped, tag = 'input window, operand 1, single buffered']
    #allocation6 [shape = 's32[1]{0}', space=sflag, size = 0x4, scoped, tag = 'scoped memory for tpu_custom_call.1']
    #allocation7 [shape = 'u8[32768]{0}', space=vmem, size = 0x8000, scoped, tag = 'input window, operand 3, single buffered']
    #allocation8 [shape = 'u8[131072]{0}', space=vmem, size = 0x20000, scoped, tag = 'output window, operand 0']
    %10 = vsyncpa [#allocation3], 0
    %s11 = scalar_lea.sflag [#allocation3], 1
    %12 = vsyncpa %s11, 0
    %13 = vsyncpa [#allocation6], 0
    %14 = vsyncpa [#allocation4], 0
    %s15 = scalar_lea.sflag [#allocation4], 1
    %16 = vsyncpa %s15, 0
    loop: start=0, step=1, limit=6
    $region2: #{tpu_custom_call.1} parent=1 // loop_pre_header
      _
    $region3: #{tpu_custom_call.1} parent=1 // loop_header
      %s18 = sphi 0, %s22
      %p19 = scmp.ge.s32.totalorder %s18, 6
      %s28 = sphi 0, %s30
      %s31 = sphi 0, %s28
      %s32 = sphi 0, %s31
      %s48 = sphi 0, %s32
      %s52 = sphi 0, %s52
      %s54 = sphi 0, %s52
      %s55 = sphi 0, %s54
      %s69 = sphi 0, %s55
      %s73 = sphi 0, %s73
      %s75 = sphi 0, %s73
      %s76 = sphi 0, %s75
      %s90 = sphi 0, %s76
      %s94 = sphi 0, %s94
      %s96 = sphi 0, %s94
      %s97 = sphi 0, %s96
      %s111 = sphi 0, %s97
      %s115 = sphi 0, %s115
      %s117 = sphi 0, %s115
      %s118 = sphi 0, %s117
      %s132 = sphi 0, %s118
      %s138 = sphi 0, %s140
      %s141 = sphi 0, %s138
      %s142 = sphi 0, %s141
      %s158 = sphi 0, %s142
    $region4: #{tpu_custom_call.1} parent=1 // loop_header_branch
      %21 = sbr.rel (%p19) target = $region8
    $region5: #{tpu_custom_call.1} parent=1 // loop_body
      %s23 = ssub.s32 %s18, 1
      %s24 = ssub.s32 %s18, 2
      %s25 = sadd.s32 %s18, 1
      %s26 = ssub.s32 %s18, %s25
      %p27 = scmp.eq.s32.totalorder %s26, 0
      %s29 = sadd.s32 %s28, 1
      %s30 = scalar_select %p27, %s28, %s29
      %p33 = pneg %p27
      %p34 = scmp.eq.s32.totalorder %s18, 3
      %p35 = por %p33, %p34
      %p36 = scmp.ne.s32.totalorder %s28, %s31
      %p37 = scmp.eq.s32.totalorder %s18, 0
      %p38 = por %p36, %p37
      %p39 = scmp.ne.s32.totalorder %s28, %s31
      %p40 = scmp.eq.s32.totalorder %s23, 3
      %p41 = por %p39, %p40
      %p42 = scmp.ne.s32.totalorder %s31, %s32
      %p43 = scmp.eq.s32.totalorder %s23, 0
      %p44 = por %p42, %p43
      %p45 = scmp.ne.s32.totalorder %s31, %s32
      %p46 = scmp.eq.s32.totalorder %s24, 3
      %p47 = por %p45, %p46
      %p49 = scmp.ne.s32.totalorder %s32, %s48
      %p50 = scmp.eq.s32.totalorder %s24, 0
      %p51 = por %p49, %p50
      %s53 = sadd.s32 %s52, 1
      %p56 = scmp.eq.s32.totalorder %s18, 3
      %p57 = scmp.ne.s32.totalorder %s52, %s54
      %p58 = scmp.eq.s32.totalorder %s18, 0
      %p59 = por %p57, %p58
      %p60 = scmp.ne.s32.totalorder %s52, %s54
      %p61 = scmp.eq.s32.totalorder %s23, 3
      %p62 = por %p60, %p61
      %p63 = scmp.ne.s32.totalorder %s54, %s55
      %p64 = scmp.eq.s32.totalorder %s23, 0
      %p65 = por %p63, %p64
      %p66 = scmp.ne.s32.totalorder %s54, %s55
      %p67 = scmp.eq.s32.totalorder %s24, 3
      %p68 = por %p66, %p67
      %p70 = scmp.ne.s32.totalorder %s55, %s69
      %p71 = scmp.eq.s32.totalorder %s24, 0
      %p72 = por %p70, %p71
      %s74 = sadd.s32 %s73, 1
      %p77 = scmp.eq.s32.totalorder %s18, 3
      %p78 = scmp.ne.s32.totalorder %s73, %s75
      %p79 = scmp.eq.s32.totalorder %s18, 0
      %p80 = por %p78, %p79
      %p81 = scmp.ne.s32.totalorder %s73, %s75
      %p82 = scmp.eq.s32.totalorder %s23, 3
      %p83 = por %p81, %p82
      %p84 = scmp.ne.s32.totalorder %s75, %s76
      %p85 = scmp.eq.s32.totalorder %s23, 0
      %p86 = por %p84, %p85
      %p87 = scmp.ne.s32.totalorder %s75, %s76
      %p88 = scmp.eq.s32.totalorder %s24, 3
      %p89 = por %p87, %p88
      %p91 = scmp.ne.s32.totalorder %s76, %s90
      %p92 = scmp.eq.s32.totalorder %s24, 0
      %p93 = por %p91, %p92
      %s95 = sadd.s32 %s94, 1
      %p98 = scmp.eq.s32.totalorder %s18, 3
      %p99 = scmp.ne.s32.totalorder %s94, %s96
      %p100 = scmp.eq.s32.totalorder %s18, 0
      %p101 = por %p99, %p100
      %p102 = scmp.ne.s32.totalorder %s94, %s96
      %p103 = scmp.eq.s32.totalorder %s23, 3
      %p104 = por %p102, %p103
      %p105 = scmp.ne.s32.totalorder %s96, %s97
      %p106 = scmp.eq.s32.totalorder %s23, 0
      %p107 = por %p105, %p106
      %p108 = scmp.ne.s32.totalorder %s96, %s97
      %p109 = scmp.eq.s32.totalorder %s24, 3
      %p110 = por %p108, %p109
      %p112 = scmp.ne.s32.totalorder %s97, %s111
      %p113 = scmp.eq.s32.totalorder %s24, 0
      %p114 = por %p112, %p113
      %s116 = sadd.s32 %s115, 1
      %p119 = scmp.eq.s32.totalorder %s18, 3
      %p120 = scmp.ne.s32.totalorder %s115, %s117
      %p121 = scmp.eq.s32.totalorder %s18, 0
      %p122 = por %p120, %p121
      %p123 = scmp.ne.s32.totalorder %s115, %s117
      %p124 = scmp.eq.s32.totalorder %s23, 3
      %p125 = por %p123, %p124
      %p126 = scmp.ne.s32.totalorder %s117, %s118
      %p127 = scmp.eq.s32.totalorder %s23, 0
      %p128 = por %p126, %p127
      %p129 = scmp.ne.s32.totalorder %s117, %s118
      %p130 = scmp.eq.s32.totalorder %s24, 3
      %p131 = por %p129, %p130
      %p133 = scmp.ne.s32.totalorder %s118, %s132
      %p134 = scmp.eq.s32.totalorder %s24, 0
      %p135 = por %p133, %p134
      %s136 = ssub.s32 %s18, %s25
      %p137 = scmp.eq.s32.totalorder %s136, 0
      %s139 = sadd.s32 %s138, 1
      %s140 = scalar_select %p137, %s138, %s139
      %p143 = pneg %p137
      %p144 = scmp.eq.s32.totalorder %s18, 3
      %p145 = por %p143, %p144
      %p146 = scmp.ne.s32.totalorder %s138, %s141
      %p147 = scmp.eq.s32.totalorder %s18, 0
      %p148 = por %p146, %p147
      %p149 = scmp.ne.s32.totalorder %s138, %s141
      %p150 = scmp.eq.s32.totalorder %s23, 3
      %p151 = por %p149, %p150
      %p152 = scmp.ne.s32.totalorder %s141, %s142
      %p153 = scmp.eq.s32.totalorder %s23, 0
      %p154 = por %p152, %p153
      %p155 = scmp.ne.s32.totalorder %s141, %s142
      %p156 = scmp.eq.s32.totalorder %s24, 3
      %p157 = por %p155, %p156
      %p159 = scmp.ne.s32.totalorder %s142, %s158
      %p160 = scmp.eq.s32.totalorder %s24, 0
      %p161 = por %p159, %p160
      %p162 = scmp.le.s32.totalorder 1, %s18
      %p163 = scmp.lt.s32.totalorder %s18, 5
      %p164 = pnand %p162, %p163
      %p165 = pneg %p164
      // Predicated region
      $region9: #{tpu_custom_call.1} parent=5 // pred_check
        _
      $region10: #{tpu_custom_call.1} parent=5 // pred_check_branch
        %167 = sbr.rel (%p164) target = $region12
      $region11: #{tpu_custom_call.1} parent=5 // pred_region
        %s168 = ssub.s32 %s18, 1
        // Predicated region
        $region13: #{tpu_custom_call.1} parent=11 // pred_check
          %p169 = pneg %p65
        $region14: #{tpu_custom_call.1} parent=11 // pred_check_branch
          %171 = sbr.rel (%p169) target = $region16
        $region15: #{tpu_custom_call.1} parent=11 // pred_region
          %173 = vsyncadd [#allocation6], 0
          %s174 = sshll.u32 %s1, 4
          %s175 = int_to_ptr.hbm [resolvable:$true] %s174
          %s176 = sshll.u32 [#allocation5], 4
          %s177 = int_to_ptr.vmem [resolvable:$true] %s176
          %182 = dma.hbm_to_vmem [thread:$0]  %s175, 1024, %s177, [#allocation6], 64, 64, 4
        $region16: #{tpu_custom_call.1} parent=11 // pred_fallthru
          _
        // Predicated region
        $region17: #{tpu_custom_call.1} parent=11 // pred_check
          %p183 = pneg %p86
        $region18: #{tpu_custom_call.1} parent=11 // pred_check_branch
          %185 = sbr.rel (%p183) target = $region20
        $region19: #{tpu_custom_call.1} parent=11 // pred_region
          _
        $region20: #{tpu_custom_call.1} parent=11 // pred_fallthru
          _
        // Predicated region
        $region21: #{tpu_custom_call.1} parent=11 // pred_check
          %p186 = pneg %p107
        $region22: #{tpu_custom_call.1} parent=11 // pred_check_branch
          %188 = sbr.rel (%p186) target = $region24
        $region23: #{tpu_custom_call.1} parent=11 // pred_region
          %190 = vsyncadd [#allocation6], 0
          %s191 = sshll.u32 %s3, 4
          %s192 = int_to_ptr.hbm [resolvable:$true] %s191
          %s193 = sshll.u32 [#allocation7], 4
          %s194 = int_to_ptr.vmem [resolvable:$true] %s193
          %199 = dma.hbm_to_vmem [thread:$0]  %s192, 1024, %s194, [#allocation6], 64, 64, 4
        $region24: #{tpu_custom_call.1} parent=11 // pred_fallthru
          _
        // Predicated region
        $region25: #{tpu_custom_call.1} parent=11 // pred_check
          %p200 = pneg %p128
        $region26: #{tpu_custom_call.1} parent=11 // pred_check_branch
          %202 = sbr.rel (%p200) target = $region28
        $region27: #{tpu_custom_call.1} parent=11 // pred_region
          _
        $region28: #{tpu_custom_call.1} parent=11 // pred_fallthru
          _
      $region12: #{tpu_custom_call.1} parent=5 // pred_fallthru
        _
      %p203 = scmp.lt.s32.totalorder %s18, 4
      // Predicated region
      $region29: #{tpu_custom_call.1} parent=5 // pred_check
        %p204 = pneg %p203
      $region30: #{tpu_custom_call.1} parent=5 // pred_check_branch
        %206 = sbr.rel (%p204) target = $region32
      $region31: #{tpu_custom_call.1} parent=5 // pred_region
        // Predicated region
        $region33: #{tpu_custom_call.1} parent=31 // pred_check
          %p207 = pneg %p38
        $region34: #{tpu_custom_call.1} parent=31 // pred_check_branch
          %209 = sbr.rel (%p207) target = $region36
        $region35: #{tpu_custom_call.1} parent=31 // pred_region
          %s210 = sand.u32 %s28, 1
          %s211 = scalar_lea.sflag [#allocation3], %s210
          %s212 = sand.u32 %s28, 1
          %s213 = smul.addr %s212, 128
          %s214 = scalar_lea.vmem [#allocation2], %s213
          %s215 = smul.u32 16, %s18
          %217 = vsyncadd %s211, 0
          %s218 = smul.addr %s215, 8
          %s219 = scalar_lea.hbm %s0, %s218
          %s220 = sshll.u32 %s219, 4
          %s221 = int_to_ptr.hbm [resolvable:$true] %s220
          %s222 = sshll.u32 %s214, 4
          %s223 = int_to_ptr.vmem [resolvable:$true] %s222
          %228 = dma.hbm_to_vmem [thread:$0]  %s221, 2048, %s223, %s211, 128, 128, 8
        $region36: #{tpu_custom_call.1} parent=31 // pred_fallthru
          _
      $region32: #{tpu_custom_call.1} parent=5 // pred_fallthru
        _
      %p229 = scmp.le.s32.totalorder 1, %s18
      %p230 = scmp.lt.s32.totalorder %s18, 5
      %p231 = pnand %p229, %p230
      %p232 = pneg %p231
      // Predicated region
      $region37: #{tpu_custom_call.1} parent=5 // pred_check
        _
      $region38: #{tpu_custom_call.1} parent=5 // pred_check_branch
        %234 = sbr.rel (%p231) target = $region40
      $region39: #{tpu_custom_call.1} parent=5 // pred_region
        %s235 = ssub.s32 %s18, 1
        %s236 = sand.u32 %s31, 1
        %s237 = scalar_lea.sflag [#allocation3], %s236
        %s238 = sand.u32 %s31, 1
        %s239 = smul.addr %s238, 128
        %s240 = scalar_lea.vmem [#allocation2], %s239
        // Predicated region
        $region41: #{tpu_custom_call.1} parent=39 // pred_check
          %p241 = pneg %p44
        $region42: #{tpu_custom_call.1} parent=39 // pred_check_branch
          %243 = sbr.rel (%p241) target = $region44
        $region43: #{tpu_custom_call.1} parent=39 // pred_region
          %245 = dma.done %s237, 2048
        $region44: #{tpu_custom_call.1} parent=39 // pred_fallthru
          _
        // Predicated region
        $region45: #{tpu_custom_call.1} parent=39 // pred_check
          %p246 = pneg %p65
        $region46: #{tpu_custom_call.1} parent=39 // pred_check_branch
          %248 = sbr.rel (%p246) target = $region48
        $region47: #{tpu_custom_call.1} parent=39 // pred_region
          %250 = dma.done [#allocation6], 1024
        $region48: #{tpu_custom_call.1} parent=39 // pred_fallthru
          _
        // Predicated region
        $region49: #{tpu_custom_call.1} parent=39 // pred_check
          %p251 = pneg %p107
        $region50: #{tpu_custom_call.1} parent=39 // pred_check_branch
          %253 = sbr.rel (%p251) target = $region52
        $region51: #{tpu_custom_call.1} parent=39 // pred_region
          %255 = dma.done [#allocation6], 1024
        $region52: #{tpu_custom_call.1} parent=39 // pred_fallthru
          _
        %s256 = sand.u32 %s31, 1
        %s257 = scalar_lea.sflag [#allocation3], %s256
        %s258 = sand.u32 %s31, 1
        %s259 = smul.addr %s258, 128
        %s260 = scalar_lea.vmem [#allocation2], %s259
        %p261 = pneg %p44
        %p262 = pneg %p41
        %p263 = pneg %p65
        %p264 = pneg %p62
        %p265 = pneg %p86
        %p266 = pneg %p83
        %p267 = pneg %p107
        %p268 = pneg %p104
        %p269 = pneg %p128
        %p270 = pneg %p125
        %p271 = pneg %p154
        %p272 = pneg %p151
        %s273 = sand.u32 %s141, 1
        %s274 = scalar_lea.sflag [#allocation4], %s273
        %s275 = sand.u32 %s141, 1
        %s276 = smul.addr %s275, 128
        %s277 = scalar_lea.vmem [#allocation8], %s276
        %s278 = smul.u32 16, %s23
        %s279 = smul.u32 16, %s23
        %v280 = vld [vmem:[%s240] sm:$0xff]
        %v281 = vld [vmem:[%s240 + $0x8] sm:$0xff]
        %v282 = vld [vmem:[%s240 + $0x10] sm:$0xff]
        %v283 = vld [vmem:[%s240 + $0x18] sm:$0xff]
        %v284 = vld [vmem:[%s240 + $0x20] sm:$0xff]
        %v285 = vld [vmem:[%s240 + $0x28] sm:$0xff]
        %v286 = vld [vmem:[%s240 + $0x30] sm:$0xff]
        %v287 = vld [vmem:[%s240 + $0x38] sm:$0xff]
        %v288 = vld [vmem:[%s240 + $0x40] sm:$0xff]
        %v289 = vld [vmem:[%s240 + $0x48] sm:$0xff]
        %v290 = vld [vmem:[%s240 + $0x50] sm:$0xff]
        %v291 = vld [vmem:[%s240 + $0x58] sm:$0xff]
        %v292 = vld [vmem:[%s240 + $0x60] sm:$0xff]
        %v293 = vld [vmem:[%s240 + $0x68] sm:$0xff]
        %v294 = vld [vmem:[%s240 + $0x70] sm:$0xff]
        %v295 = vld [vmem:[%s240 + $0x78] sm:$0xff]
        %v296 = vpack.c.bf16 %v281, %v280
        %v297 = vpack.c.bf16 %v283, %v282
        %v298 = vpack.c.bf16 %v285, %v284
        %v299 = vpack.c.bf16 %v287, %v286
        %v300 = vpack.c.bf16 %v289, %v288
        %v301 = vpack.c.bf16 %v291, %v290
        %v302 = vpack.c.bf16 %v293, %v292
        %v303 = vpack.c.bf16 %v295, %v294
        %v304 = vld [vmem:[#allocation5] sm:$0xf]
        %v305 = vld [vmem:[#allocation5 + $0x4] sm:$0xf]
        %v306 = vld [vmem:[#allocation5 + $0x8] sm:$0xf]
        %v307 = vld [vmem:[#allocation5 + $0xc] sm:$0xf]
        %v308 = vld [vmem:[#allocation5 + $0x10] sm:$0xf]
        %v309 = vld [vmem:[#allocation5 + $0x14] sm:$0xf]
        %v310 = vld [vmem:[#allocation5 + $0x18] sm:$0xf]
        %v311 = vld [vmem:[#allocation5 + $0x1c] sm:$0xf]
        %v312 = vld [vmem:[#allocation5 + $0x20] sm:$0xf]
        %v313 = vld [vmem:[#allocation5 + $0x24] sm:$0xf]
        %v314 = vld [vmem:[#allocation5 + $0x28] sm:$0xf]
        %v315 = vld [vmem:[#allocation5 + $0x2c] sm:$0xf]
        %v316 = vld [vmem:[#allocation5 + $0x30] sm:$0xf]
        %v317 = vld [vmem:[#allocation5 + $0x34] sm:$0xf]
        %v318 = vld [vmem:[#allocation5 + $0x38] sm:$0xf]
        %v319 = vld [vmem:[#allocation5 + $0x3c] sm:$0xf]
        %v320 = vld [vmem:[%s2] sm:$0x1]
        %v322 = vperm.slane %v320, 0
        %v340 = vunpack.c.l.b16 %v304
        %v341 = vunpack.c.l.b16 %v305
        %v342 = vunpack.c.l.b16 %v306
        %v343 = vunpack.c.l.b16 %v307
        %v344 = vunpack.c.l.b16 %v308
        %v345 = vunpack.c.l.b16 %v309
        %v346 = vunpack.c.l.b16 %v310
        %v347 = vunpack.c.l.b16 %v311
        %v348 = vunpack.c.l.b16 %v312
        %v349 = vunpack.c.l.b16 %v313
        %v350 = vunpack.c.l.b16 %v314
        %v351 = vunpack.c.l.b16 %v315
        %v352 = vunpack.c.l.b16 %v316
        %v353 = vunpack.c.l.b16 %v317
        %v354 = vunpack.c.l.b16 %v318
        %v355 = vunpack.c.l.b16 %v319
        %v356 = vpack.c.b16 %v341, %v340
        %v357 = vpack.c.b16 %v343, %v342
        %v358 = vpack.c.b16 %v345, %v344
        %v359 = vpack.c.b16 %v347, %v346
        %v360 = vpack.c.b16 %v349, %v348
        %v361 = vpack.c.b16 %v351, %v350
        %v362 = vpack.c.b16 %v353, %v352
        %v363 = vpack.c.b16 %v355, %v354
        %372 = vmatpush.bf16.msra.mxu0 %v363
        %373 = vmatpush.bf16.msra.mxu0 %v362
        %374 = vmatpush.bf16.msra.mxu0 %v361
        %375 = vmatpush.bf16.msra.mxu0 %v360
        %376 = vmatpush.bf16.msra.mxu0 %v359
        %377 = vmatpush.bf16.msra.mxu0 %v358
        %378 = vmatpush.bf16.msra.mxu0 %v357
        %379 = vmatpush.bf16.msra.mxu0 %v356
        %380 = vmatmul.bf16.gmra.mxu0 %v296
        %v381 = vpop.f32.mrf.mxu0
        %v382 = vadd.f32 %v322, %v381
        %v383 = vpop.f32.mrf.mxu0
        %v384 = vadd.f32 %v322, %v383
        %385 = vmatmul.bf16.gmra.mxu0 %v297
        %v386 = vpop.f32.mrf.mxu0
        %v387 = vadd.f32 %v322, %v386
        %v388 = vpop.f32.mrf.mxu0
        %v389 = vadd.f32 %v322, %v388
        %390 = vmatmul.bf16.gmra.mxu0 %v298
        %v391 = vpop.f32.mrf.mxu0
        %v392 = vadd.f32 %v322, %v391
        %v393 = vpop.f32.mrf.mxu0
        %v394 = vadd.f32 %v322, %v393
        %395 = vmatmul.bf16.gmra.mxu0 %v299
        %v396 = vpop.f32.mrf.mxu0
        %v397 = vadd.f32 %v322, %v396
        %v398 = vpop.f32.mrf.mxu0
        %v399 = vadd.f32 %v322, %v398
        %400 = vmatmul.bf16.gmra.mxu0 %v300
        %v401 = vpop.f32.mrf.mxu0
        %v402 = vadd.f32 %v322, %v401
        %v403 = vpop.f32.mrf.mxu0
        %v404 = vadd.f32 %v322, %v403
        %405 = vmatmul.bf16.gmra.mxu0 %v301
        %v406 = vpop.f32.mrf.mxu0
        %v407 = vadd.f32 %v322, %v406
        %v408 = vpop.f32.mrf.mxu0
        %v409 = vadd.f32 %v322, %v408
        %410 = vmatmul.bf16.gmra.mxu0 %v302
        %v411 = vpop.f32.mrf.mxu0
        %v412 = vadd.f32 %v322, %v411
        %v413 = vpop.f32.mrf.mxu0
        %v414 = vadd.f32 %v322, %v413
        %415 = vmatmul.bf16.gmra.mxu0 %v303
        %v416 = vpop.f32.mrf.mxu0
        %v417 = vadd.f32 %v322, %v416
        %v418 = vpop.f32.mrf.mxu0
        %v419 = vadd.f32 %v322, %v418
        %420 = vdwg.mxu0
        %v421 = vmax.f32 %v382, 0.0
        %v422 = vmax.f32 %v384, 0.0
        %v423 = vmax.f32 %v387, 0.0
        %v424 = vmax.f32 %v389, 0.0
        %v425 = vmax.f32 %v392, 0.0
        %v426 = vmax.f32 %v394, 0.0
        %v427 = vmax.f32 %v397, 0.0
        %v428 = vmax.f32 %v399, 0.0
        %v429 = vmax.f32 %v402, 0.0
        %v430 = vmax.f32 %v404, 0.0
        %v431 = vmax.f32 %v407, 0.0
        %v432 = vmax.f32 %v409, 0.0
        %v433 = vmax.f32 %v412, 0.0
        %v434 = vmax.f32 %v414, 0.0
        %v435 = vmax.f32 %v417, 0.0
        %v436 = vmax.f32 %v419, 0.0
        %v437 = vpack.c.bf16 %v422, %v421
        %v438 = vpack.c.bf16 %v424, %v423
        %v439 = vpack.c.bf16 %v426, %v425
        %v440 = vpack.c.bf16 %v428, %v427
        %v441 = vpack.c.bf16 %v430, %v429
        %v442 = vpack.c.bf16 %v432, %v431
        %v443 = vpack.c.bf16 %v434, %v433
        %v444 = vpack.c.bf16 %v436, %v435
        %v445 = vld [vmem:[#allocation7] sm:$0xf]
        %v446 = vld [vmem:[#allocation7 + $0x4] sm:$0xf]
        %v447 = vld [vmem:[#allocation7 + $0x8] sm:$0xf]
        %v448 = vld [vmem:[#allocation7 + $0xc] sm:$0xf]
        %v449 = vld [vmem:[#allocation7 + $0x10] sm:$0xf]
        %v450 = vld [vmem:[#allocation7 + $0x14] sm:$0xf]
        %v451 = vld [vmem:[#allocation7 + $0x18] sm:$0xf]
        %v452 = vld [vmem:[#allocation7 + $0x1c] sm:$0xf]
        %v453 = vld [vmem:[#allocation7 + $0x20] sm:$0xf]
        %v454 = vld [vmem:[#allocation7 + $0x24] sm:$0xf]
        %v455 = vld [vmem:[#allocation7 + $0x28] sm:$0xf]
        %v456 = vld [vmem:[#allocation7 + $0x2c] sm:$0xf]
        %v457 = vld [vmem:[#allocation7 + $0x30] sm:$0xf]
        %v458 = vld [vmem:[#allocation7 + $0x34] sm:$0xf]
        %v459 = vld [vmem:[#allocation7 + $0x38] sm:$0xf]
        %v460 = vld [vmem:[#allocation7 + $0x3c] sm:$0xf]
        %v461 = vld [vmem:[%s4] sm:$0x1]
        %v463 = vperm.slane %v461, 0
        %v481 = vunpack.c.l.b16 %v445
        %v482 = vunpack.c.l.b16 %v446
        %v483 = vunpack.c.l.b16 %v447
        %v484 = vunpack.c.l.b16 %v448
        %v485 = vunpack.c.l.b16 %v449
        %v486 = vunpack.c.l.b16 %v450
        %v487 = vunpack.c.l.b16 %v451
        %v488 = vunpack.c.l.b16 %v452
        %v489 = vunpack.c.l.b16 %v453
        %v490 = vunpack.c.l.b16 %v454
        %v491 = vunpack.c.l.b16 %v455
        %v492 = vunpack.c.l.b16 %v456
        %v493 = vunpack.c.l.b16 %v457
        %v494 = vunpack.c.l.b16 %v458
        %v495 = vunpack.c.l.b16 %v459
        %v496 = vunpack.c.l.b16 %v460
        %v497 = vpack.c.b16 %v482, %v481
        %v498 = vpack.c.b16 %v484, %v483
        %v499 = vpack.c.b16 %v486, %v485
        %v500 = vpack.c.b16 %v488, %v487
        %v501 = vpack.c.b16 %v490, %v489
        %v502 = vpack.c.b16 %v492, %v491
        %v503 = vpack.c.b16 %v494, %v493
        %v504 = vpack.c.b16 %v496, %v495
        %513 = vmatpush.bf16.msra.mxu0 %v504
        %514 = vmatpush.bf16.msra.mxu0 %v503
        %515 = vmatpush.bf16.msra.mxu0 %v502
        %516 = vmatpush.bf16.msra.mxu0 %v501
        %517 = vmatpush.bf16.msra.mxu0 %v500
        %518 = vmatpush.bf16.msra.mxu0 %v499
        %519 = vmatpush.bf16.msra.mxu0 %v498
        %520 = vmatpush.bf16.msra.mxu0 %v497
        %521 = vmatmul.bf16.gmra.mxu0 %v437
        %v522 = vpop.f32.mrf.mxu0
        %v523 = vadd.f32 %v463, %v522
        %v524 = vpop.f32.mrf.mxu0
        %v525 = vadd.f32 %v463, %v524
        %526 = vmatmul.bf16.gmra.mxu0 %v438
        %v527 = vpop.f32.mrf.mxu0
        %v528 = vadd.f32 %v463, %v527
        %v529 = vpop.f32.mrf.mxu0
        %v530 = vadd.f32 %v463, %v529
        %531 = vmatmul.bf16.gmra.mxu0 %v439
        %v532 = vpop.f32.mrf.mxu0
        %v533 = vadd.f32 %v463, %v532
        %v534 = vpop.f32.mrf.mxu0
        %v535 = vadd.f32 %v463, %v534
        %536 = vmatmul.bf16.gmra.mxu0 %v440
        %v537 = vpop.f32.mrf.mxu0
        %v538 = vadd.f32 %v463, %v537
        %v539 = vpop.f32.mrf.mxu0
        %v540 = vadd.f32 %v463, %v539
        %541 = vmatmul.bf16.gmra.mxu0 %v441
        %v542 = vpop.f32.mrf.mxu0
        %v543 = vadd.f32 %v463, %v542
        %v544 = vpop.f32.mrf.mxu0
        %v545 = vadd.f32 %v463, %v544
        %546 = vmatmul.bf16.gmra.mxu0 %v442
        %v547 = vpop.f32.mrf.mxu0
        %v548 = vadd.f32 %v463, %v547
        %v549 = vpop.f32.mrf.mxu0
        %v550 = vadd.f32 %v463, %v549
        %551 = vmatmul.bf16.gmra.mxu0 %v443
        %v552 = vpop.f32.mrf.mxu0
        %v553 = vadd.f32 %v463, %v552
        %v554 = vpop.f32.mrf.mxu0
        %v555 = vadd.f32 %v463, %v554
        %556 = vmatmul.bf16.gmra.mxu0 %v444
        %v557 = vpop.f32.mrf.mxu0
        %v558 = vadd.f32 %v463, %v557
        %v559 = vpop.f32.mrf.mxu0
        %v560 = vadd.f32 %v463, %v559
        %561 = vdwg.mxu0
        %v562 = vxor.u32 %v523, 2147483648
        %v563 = vxor.u32 %v525, 2147483648
        %v564 = vxor.u32 %v528, 2147483648
        %v565 = vxor.u32 %v530, 2147483648
        %v566 = vxor.u32 %v533, 2147483648
        %v567 = vxor.u32 %v535, 2147483648
        %v568 = vxor.u32 %v538, 2147483648
        %v569 = vxor.u32 %v540, 2147483648
        %v570 = vxor.u32 %v543, 2147483648
        %v571 = vxor.u32 %v545, 2147483648
        %v572 = vxor.u32 %v548, 2147483648
        %v573 = vxor.u32 %v550, 2147483648
        %v574 = vxor.u32 %v553, 2147483648
        %v575 = vxor.u32 %v555, 2147483648
        %v576 = vxor.u32 %v558, 2147483648
        %v577 = vxor.u32 %v560, 2147483648
        %v578 = vmul.f32 %v562, 1.442695
        %v579 = vpow.pop %v578
        %v580 = vmul.f32 %v563, 1.442695
        %v581 = vpow.pop %v580
        %v582 = vmul.f32 %v564, 1.442695
        %v583 = vpow.pop %v582
        %v584 = vmul.f32 %v565, 1.442695
        %v585 = vpow.pop %v584
        %v586 = vmul.f32 %v566, 1.442695
        %v587 = vpow.pop %v586
        %v588 = vmul.f32 %v567, 1.442695
        %v589 = vpow.pop %v588
        %v590 = vmul.f32 %v568, 1.442695
        %v591 = vpow.pop %v590
        %v592 = vmul.f32 %v569, 1.442695
        %v593 = vpow.pop %v592
        %v594 = vmul.f32 %v570, 1.442695
        %v595 = vpow.pop %v594
        %v596 = vmul.f32 %v571, 1.442695
        %v597 = vpow.pop %v596
        %v598 = vmul.f32 %v572, 1.442695
        %v599 = vpow.pop %v598
        %v600 = vmul.f32 %v573, 1.442695
        %v601 = vpow.pop %v600
        %v602 = vmul.f32 %v574, 1.442695
        %v603 = vpow.pop %v602
        %v604 = vmul.f32 %v575, 1.442695
        %v605 = vpow.pop %v604
        %v606 = vmul.f32 %v576, 1.442695
        %v607 = vpow.pop %v606
        %v608 = vmul.f32 %v577, 1.442695
        %v609 = vpow.pop %v608
        %v610 = vadd.f32 %v579, 1.0
        %v611 = vadd.f32 %v581, 1.0
        %v612 = vadd.f32 %v583, 1.0
        %v613 = vadd.f32 %v585, 1.0
        %v614 = vadd.f32 %v587, 1.0
        %v615 = vadd.f32 %v589, 1.0
        %v616 = vadd.f32 %v591, 1.0
        %v617 = vadd.f32 %v593, 1.0
        %v618 = vadd.f32 %v595, 1.0
        %v619 = vadd.f32 %v597, 1.0
        %v620 = vadd.f32 %v599, 1.0
        %v621 = vadd.f32 %v601, 1.0
        %v622 = vadd.f32 %v603, 1.0
        %v623 = vadd.f32 %v605, 1.0
        %v624 = vadd.f32 %v607, 1.0
        %v625 = vadd.f32 %v609, 1.0
        %v626 = vrcp.pop %v610
        %v627 = vmul.f32 %v610, %v626
        %v628 = vsub.f32 1.0, %v627
        %v629 = vmul.f32 %v626, %v628
        %v630 = vadd.f32 %v626, %v629
        %vm631 = vweird.f32 %v610
        %vm632 = vweird.f32 %v626
        %vm633 = vmor %vm631, %vm632
        %v634 = vsel %vm633, %v626, %v630
        %v635 = vand.u32 2147483647, %v610
        %vm636 = vcmp.eq.f32.partialorder %v635, 8.507059e+37
        %v637 = vand.u32 %v610, 2147483648
        %v638 = vor.u32 1.1754944e-38, %v637
        %v639 = vsel %vm636, %v638, %v634
        %v640 = vmul.f32 1.0, %v639
        %v641 = vrcp.pop %v611
        %v642 = vmul.f32 %v611, %v641
        %v643 = vsub.f32 1.0, %v642
        %v644 = vmul.f32 %v641, %v643
        %v645 = vadd.f32 %v641, %v644
        %vm646 = vweird.f32 %v611
        %vm647 = vweird.f32 %v641
        %vm648 = vmor %vm646, %vm647
        %v649 = vsel %vm648, %v641, %v645
        %v650 = vand.u32 2147483647, %v611
        %vm651 = vcmp.eq.f32.partialorder %v650, 8.507059e+37
        %v652 = vand.u32 %v611, 2147483648
        %v653 = vor.u32 1.1754944e-38, %v652
        %v654 = vsel %vm651, %v653, %v649
        %v655 = vmul.f32 1.0, %v654
        %v656 = vrcp.pop %v612
        %v657 = vmul.f32 %v612, %v656
        %v658 = vsub.f32 1.0, %v657
        %v659 = vmul.f32 %v656, %v658
        %v660 = vadd.f32 %v656, %v659
        %vm661 = vweird.f32 %v612
        %vm662 = vweird.f32 %v656
        %vm663 = vmor %vm661, %vm662
        %v664 = vsel %vm663, %v656, %v660
        %v665 = vand.u32 2147483647, %v612
        %vm666 = vcmp.eq.f32.partialorder %v665, 8.507059e+37
        %v667 = vand.u32 %v612, 2147483648
        %v668 = vor.u32 1.1754944e-38, %v667
        %v669 = vsel %vm666, %v668, %v664
        %v670 = vmul.f32 1.0, %v669
        %v671 = vrcp.pop %v613
        %v672 = vmul.f32 %v613, %v671
        %v673 = vsub.f32 1.0, %v672
        %v674 = vmul.f32 %v671, %v673
        %v675 = vadd.f32 %v671, %v674
        %vm676 = vweird.f32 %v613
        %vm677 = vweird.f32 %v671
        %vm678 = vmor %vm676, %vm677
        %v679 = vsel %vm678, %v671, %v675
        %v680 = vand.u32 2147483647, %v613
        %vm681 = vcmp.eq.f32.partialorder %v680, 8.507059e+37
        %v682 = vand.u32 %v613, 2147483648
        %v683 = vor.u32 1.1754944e-38, %v682
        %v684 = vsel %vm681, %v683, %v679
        %v685 = vmul.f32 1.0, %v684
        %v686 = vrcp.pop %v614
        %v687 = vmul.f32 %v614, %v686
        %v688 = vsub.f32 1.0, %v687
        %v689 = vmul.f32 %v686, %v688
        %v690 = vadd.f32 %v686, %v689
        %vm691 = vweird.f32 %v614
        %vm692 = vweird.f32 %v686
        %vm693 = vmor %vm691, %vm692
        %v694 = vsel %vm693, %v686, %v690
        %v695 = vand.u32 2147483647, %v614
        %vm696 = vcmp.eq.f32.partialorder %v695, 8.507059e+37
        %v697 = vand.u32 %v614, 2147483648
        %v698 = vor.u32 1.1754944e-38, %v697
        %v699 = vsel %vm696, %v698, %v694
        %v700 = vmul.f32 1.0, %v699
        %v701 = vrcp.pop %v615
        %v702 = vmul.f32 %v615, %v701
        %v703 = vsub.f32 1.0, %v702
        %v704 = vmul.f32 %v701, %v703
        %v705 = vadd.f32 %v701, %v704
        %vm706 = vweird.f32 %v615
        %vm707 = vweird.f32 %v701
        %vm708 = vmor %vm706, %vm707
        %v709 = vsel %vm708, %v701, %v705
        %v710 = vand.u32 2147483647, %v615
        %vm711 = vcmp.eq.f32.partialorder %v710, 8.507059e+37
        %v712 = vand.u32 %v615, 2147483648
        %v713 = vor.u32 1.1754944e-38, %v712
        %v714 = vsel %vm711, %v713, %v709
        %v715 = vmul.f32 1.0, %v714
        %v716 = vrcp.pop %v616
        %v717 = vmul.f32 %v616, %v716
        %v718 = vsub.f32 1.0, %v717
        %v719 = vmul.f32 %v716, %v718
        %v720 = vadd.f32 %v716, %v719
        %vm721 = vweird.f32 %v616
        %vm722 = vweird.f32 %v716
        %vm723 = vmor %vm721, %vm722
        %v724 = vsel %vm723, %v716, %v720
        %v725 = vand.u32 2147483647, %v616
        %vm726 = vcmp.eq.f32.partialorder %v725, 8.507059e+37
        %v727 = vand.u32 %v616, 2147483648
        %v728 = vor.u32 1.1754944e-38, %v727
        %v729 = vsel %vm726, %v728, %v724
        %v730 = vmul.f32 1.0, %v729
        %v731 = vrcp.pop %v617
        %v732 = vmul.f32 %v617, %v731
        %v733 = vsub.f32 1.0, %v732
        %v734 = vmul.f32 %v731, %v733
        %v735 = vadd.f32 %v731, %v734
        %vm736 = vweird.f32 %v617
        %vm737 = vweird.f32 %v731
        %vm738 = vmor %vm736, %vm737
        %v739 = vsel %vm738, %v731, %v735
        %v740 = vand.u32 2147483647, %v617
        %vm741 = vcmp.eq.f32.partialorder %v740, 8.507059e+37
        %v742 = vand.u32 %v617, 2147483648
        %v743 = vor.u32 1.1754944e-38, %v742
        %v744 = vsel %vm741, %v743, %v739
        %v745 = vmul.f32 1.0, %v744
        %v746 = vrcp.pop %v618
        %v747 = vmul.f32 %v618, %v746
        %v748 = vsub.f32 1.0, %v747
        %v749 = vmul.f32 %v746, %v748
        %v750 = vadd.f32 %v746, %v749
        %vm751 = vweird.f32 %v618
        %vm752 = vweird.f32 %v746
        %vm753 = vmor %vm751, %vm752
        %v754 = vsel %vm753, %v746, %v750
        %v755 = vand.u32 2147483647, %v618
        %vm756 = vcmp.eq.f32.partialorder %v755, 8.507059e+37
        %v757 = vand.u32 %v618, 2147483648
        %v758 = vor.u32 1.1754944e-38, %v757
        %v759 = vsel %vm756, %v758, %v754
        %v760 = vmul.f32 1.0, %v759
        %v761 = vrcp.pop %v619
        %v762 = vmul.f32 %v619, %v761
        %v763 = vsub.f32 1.0, %v762
        %v764 = vmul.f32 %v761, %v763
        %v765 = vadd.f32 %v761, %v764
        %vm766 = vweird.f32 %v619
        %vm767 = vweird.f32 %v761
        %vm768 = vmor %vm766, %vm767
        %v769 = vsel %vm768, %v761, %v765
        %v770 = vand.u32 2147483647, %v619
        %vm771 = vcmp.eq.f32.partialorder %v770, 8.507059e+37
        %v772 = vand.u32 %v619, 2147483648
        %v773 = vor.u32 1.1754944e-38, %v772
        %v774 = vsel %vm771, %v773, %v769
        %v775 = vmul.f32 1.0, %v774
        %v776 = vrcp.pop %v620
        %v777 = vmul.f32 %v620, %v776
        %v778 = vsub.f32 1.0, %v777
        %v779 = vmul.f32 %v776, %v778
        %v780 = vadd.f32 %v776, %v779
        %vm781 = vweird.f32 %v620
        %vm782 = vweird.f32 %v776
        %vm783 = vmor %vm781, %vm782
        %v784 = vsel %vm783, %v776, %v780
        %v785 = vand.u32 2147483647, %v620
        %vm786 = vcmp.eq.f32.partialorder %v785, 8.507059e+37
        %v787 = vand.u32 %v620, 2147483648
        %v788 = vor.u32 1.1754944e-38, %v787
        %v789 = vsel %vm786, %v788, %v784
        %v790 = vmul.f32 1.0, %v789
        %v791 = vrcp.pop %v621
        %v792 = vmul.f32 %v621, %v791
        %v793 = vsub.f32 1.0, %v792
        %v794 = vmul.f32 %v791, %v793
        %v795 = vadd.f32 %v791, %v794
        %vm796 = vweird.f32 %v621
        %vm797 = vweird.f32 %v791
        %vm798 = vmor %vm796, %vm797
        %v799 = vsel %vm798, %v791, %v795
        %v800 = vand.u32 2147483647, %v621
        %vm801 = vcmp.eq.f32.partialorder %v800, 8.507059e+37
        %v802 = vand.u32 %v621, 2147483648
        %v803 = vor.u32 1.1754944e-38, %v802
        %v804 = vsel %vm801, %v803, %v799
        %v805 = vmul.f32 1.0, %v804
        %v806 = vrcp.pop %v622
        %v807 = vmul.f32 %v622, %v806
        %v808 = vsub.f32 1.0, %v807
        %v809 = vmul.f32 %v806, %v808
        %v810 = vadd.f32 %v806, %v809
        %vm811 = vweird.f32 %v622
        %vm812 = vweird.f32 %v806
        %vm813 = vmor %vm811, %vm812
        %v814 = vsel %vm813, %v806, %v810
        %v815 = vand.u32 2147483647, %v622
        %vm816 = vcmp.eq.f32.partialorder %v815, 8.507059e+37
        %v817 = vand.u32 %v622, 2147483648
        %v818 = vor.u32 1.1754944e-38, %v817
        %v819 = vsel %vm816, %v818, %v814
        %v820 = vmul.f32 1.0, %v819
        %v821 = vrcp.pop %v623
        %v822 = vmul.f32 %v623, %v821
        %v823 = vsub.f32 1.0, %v822
        %v824 = vmul.f32 %v821, %v823
        %v825 = vadd.f32 %v821, %v824
        %vm826 = vweird.f32 %v623
        %vm827 = vweird.f32 %v821
        %vm828 = vmor %vm826, %vm827
        %v829 = vsel %vm828, %v821, %v825
        %v830 = vand.u32 2147483647, %v623
        %vm831 = vcmp.eq.f32.partialorder %v830, 8.507059e+37
        %v832 = vand.u32 %v623, 2147483648
        %v833 = vor.u32 1.1754944e-38, %v832
        %v834 = vsel %vm831, %v833, %v829
        %v835 = vmul.f32 1.0, %v834
        %v836 = vrcp.pop %v624
        %v837 = vmul.f32 %v624, %v836
        %v838 = vsub.f32 1.0, %v837
        %v839 = vmul.f32 %v836, %v838
        %v840 = vadd.f32 %v836, %v839
        %vm841 = vweird.f32 %v624
        %vm842 = vweird.f32 %v836
        %vm843 = vmor %vm841, %vm842
        %v844 = vsel %vm843, %v836, %v840
        %v845 = vand.u32 2147483647, %v624
        %vm846 = vcmp.eq.f32.partialorder %v845, 8.507059e+37
        %v847 = vand.u32 %v624, 2147483648
        %v848 = vor.u32 1.1754944e-38, %v847
        %v849 = vsel %vm846, %v848, %v844
        %v850 = vmul.f32 1.0, %v849
        %v851 = vrcp.pop %v625
        %v852 = vmul.f32 %v625, %v851
        %v853 = vsub.f32 1.0, %v852
        %v854 = vmul.f32 %v851, %v853
        %v855 = vadd.f32 %v851, %v854
        %vm856 = vweird.f32 %v625
        %vm857 = vweird.f32 %v851
        %vm858 = vmor %vm856, %vm857
        %v859 = vsel %vm858, %v851, %v855
        %v860 = vand.u32 2147483647, %v625
        %vm861 = vcmp.eq.f32.partialorder %v860, 8.507059e+37
        %v862 = vand.u32 %v625, 2147483648
        %v863 = vor.u32 1.1754944e-38, %v862
        %v864 = vsel %vm861, %v863, %v859
        %v865 = vmul.f32 1.0, %v864
        %v866 = vmul.f32 %v280, %v640
        %v867 = vmul.f32 %v281, %v655
        %v868 = vmul.f32 %v282, %v670
        %v869 = vmul.f32 %v283, %v685
        %v870 = vmul.f32 %v284, %v700
        %v871 = vmul.f32 %v285, %v715
        %v872 = vmul.f32 %v286, %v730
        %v873 = vmul.f32 %v287, %v745
        %v874 = vmul.f32 %v288, %v760
        %v875 = vmul.f32 %v289, %v775
        %v876 = vmul.f32 %v290, %v790
        %v877 = vmul.f32 %v291, %v805
        %v878 = vmul.f32 %v292, %v820
        %v879 = vmul.f32 %v293, %v835
        %v880 = vmul.f32 %v294, %v850
        %v881 = vmul.f32 %v295, %v865
        %882 = vst [vmem:[%s277] sm:$0xff] %v866
        %883 = vst [vmem:[%s277 + $0x8] sm:$0xff] %v867
        %884 = vst [vmem:[%s277 + $0x10] sm:$0xff] %v868
        %885 = vst [vmem:[%s277 + $0x18] sm:$0xff] %v869
        %886 = vst [vmem:[%s277 + $0x20] sm:$0xff] %v870
        %887 = vst [vmem:[%s277 + $0x28] sm:$0xff] %v871
        %888 = vst [vmem:[%s277 + $0x30] sm:$0xff] %v872
        %889 = vst [vmem:[%s277 + $0x38] sm:$0xff] %v873
        %890 = vst [vmem:[%s277 + $0x40] sm:$0xff] %v874
        %891 = vst [vmem:[%s277 + $0x48] sm:$0xff] %v875
        %892 = vst [vmem:[%s277 + $0x50] sm:$0xff] %v876
        %893 = vst [vmem:[%s277 + $0x58] sm:$0xff] %v877
        %894 = vst [vmem:[%s277 + $0x60] sm:$0xff] %v878
        %895 = vst [vmem:[%s277 + $0x68] sm:$0xff] %v879
        %896 = vst [vmem:[%s277 + $0x70] sm:$0xff] %v880
        %897 = vst [vmem:[%s277 + $0x78] sm:$0xff] %v881
        %s898 = sand.u32 %s141, 1
        %s899 = scalar_lea.sflag [#allocation4], %s898
        %s900 = sand.u32 %s141, 1
        %s901 = smul.addr %s900, 128
        %s902 = scalar_lea.vmem [#allocation8], %s901
        // Predicated region
        $region53: #{tpu_custom_call.1} parent=39 // pred_check
          %p903 = pneg %p151
        $region54: #{tpu_custom_call.1} parent=39 // pred_check_branch
          %905 = sbr.rel (%p903) target = $region56
        $region55: #{tpu_custom_call.1} parent=39 // pred_region
          %s906 = smul.u32 16, %s23
          %908 = vsyncadd %s899, 0
          %s909 = smul.addr %s906, 8
          %s910 = scalar_lea.hbm %s5, %s909
          %s911 = sshll.u32 %s902, 4
          %s912 = int_to_ptr.vmem [resolvable:$true] %s911
          %s913 = sshll.u32 %s910, 4
          %s914 = int_to_ptr.hbm [resolvable:$true] %s913
          %919 = dma.vmem_to_hbm [thread:$0]  %s912, 2048, %s914, %s899, 128, 128, 8
        $region56: #{tpu_custom_call.1} parent=39 // pred_fallthru
          _
      $region40: #{tpu_custom_call.1} parent=5 // pred_fallthru
        _
      %p920 = scmp.le.s32.totalorder 2, %s18
      // Predicated region
      $region57: #{tpu_custom_call.1} parent=5 // pred_check
        %p921 = pneg %p920
      $region58: #{tpu_custom_call.1} parent=5 // pred_check_branch
        %923 = sbr.rel (%p921) target = $region60
      $region59: #{tpu_custom_call.1} parent=5 // pred_region
        %s924 = ssub.s32 %s18, 2
        // Predicated region
        $region61: #{tpu_custom_call.1} parent=59 // pred_check
          %p925 = pneg %p157
        $region62: #{tpu_custom_call.1} parent=59 // pred_check_branch
          %927 = sbr.rel (%p925) target = $region64
        $region63: #{tpu_custom_call.1} parent=59 // pred_region
          %s928 = sand.u32 %s142, 1
          %s929 = scalar_lea.sflag [#allocation4], %s928
          %s930 = sand.u32 %s142, 1
          %s931 = smul.addr %s930, 128
          %s932 = scalar_lea.vmem [#allocation8], %s931
          %934 = dma.done %s929, 2048
        $region64: #{tpu_custom_call.1} parent=59 // pred_fallthru
          _
      $region60: #{tpu_custom_call.1} parent=5 // pred_fallthru
        _
    $region6: #{tpu_custom_call.1} parent=1 // loop_footer
      %s22 = sadd.s32 1, %s18
    $region7: #{tpu_custom_call.1} parent=1 // loop_footer_branch
      %17 = sbr.rel target = $region3
    $region8: #{tpu_custom_call.1} parent=1 // loop_exit
      _
    %935 = vsyncpa [#allocation3], 1
    %s936 = scalar_lea.sflag [#allocation3], 1
    %937 = vsyncpa %s936, 1
    %938 = vsyncpa [#allocation6], 1
    %939 = vsyncpa [#allocation4], 1
    %s940 = scalar_lea.sflag [#allocation4], 1
    %941 = vsyncpa %s940, 1

</llo_original>
